<compile_context>
chip_gen: v7x
topology: tpu7x:2x2x1
jax: 0.10.0
libtpu: 0.0.40
codegen_flags: <defaults>
</compile_context>

<pallas_src>
import jax
import jax.numpy as jnp
from jax import lax
from jax.experimental import pallas as pl
from jax.experimental.pallas import tpu as pltpu

LN_EPS = 1e-5   # PyTorch nn.LayerNorm default eps


# ----------------------------------------------------------------------------
# Pallas kernel: fused Linear -> LayerNorm -> ReLU on one row tile
# ----------------------------------------------------------------------------
def mlp_block_kernel(x_ref, w_ref, p_ref, o_ref):
    # Linear on the MXU, f32 accumulation. Operands stay in their HBM dtype
    # (f32 here); the op is memory-bound, so no point trading precision.
    y = jnp.dot(x_ref[...], w_ref[...], preferred_element_type=jnp.float32)

    p = p_ref[...].astype(jnp.float32)        # (3, C): [bias; ln_gamma; ln_beta]
    y = y + p[0:1, :]

    # LayerNorm over the channel axis, in f32 (biased variance, eps inside rsqrt
    # -> matches torch.nn.LayerNorm).
    mu = jnp.mean(y, axis=-1, keepdims=True)
    var = jnp.mean((y - mu) ** 2, axis=-1, keepdims=True)
    yn = (y - mu) * lax.rsqrt(var + LN_EPS)
    yn = yn * p[1:2, :] + p[2:3, :]

    # ReLU + store in the caller's dtype.
    o_ref[...] = jnp.maximum(yn, 0.0).astype(o_ref.dtype)


# ----------------------------------------------------------------------------
# Wrapper
# ----------------------------------------------------------------------------
def _round_up(x, m):
    return (x + m - 1) // m * m


def specificity_estimator_forward(feat, params, *, tile_rows=2048,
                                  min_rows_for_pallas=2048):
    """feat: (..., C) -> ReLU(LayerNorm(feat @ W + b)), same shape/dtype as feat."""
    C = feat.shape[-1]
    x2 = feat.reshape(-1, C)                  # free view; no dtype change, no pad
    M = x2.shape[0]

    # At the module's native shapes (a dozen rows of 64 channels) the fixed
    # pallas_call/grid overhead dominates -> plain XLA path.
    if M < min_rows_for_pallas:
        return _reference(feat, params).astype(feat.dtype)

    # Row tile: multiple of 8 sublanes, capped at tile_rows; cdiv grid handles
    # the partial last block (no wrapper-side pad/slice).
    tm = min(_round_up(tile_rows, 8), _round_up(M, 8))
    grid = (pl.cdiv(M, tm),)

    out = pl.pallas_call(
        mlp_block_kernel,
        out_shape=jax.ShapeDtypeStruct((M, C), feat.dtype),
        grid=grid,
        in_specs=[
            pl.BlockSpec((tm, C), lambda i: (i, 0)),   # activation row tile
            pl.BlockSpec((C, C), lambda i: (0, 0)),    # W (resident across grid)
            pl.BlockSpec((3, C), lambda i: (0, 0)),    # [bias; gamma; beta]
        ],
        out_specs=pl.BlockSpec((tm, C), lambda i: (i, 0)),
        compiler_params=pltpu.CompilerParams(
            dimension_semantics=("parallel",)),        # megacore split on v7x
    )(x2, params["w"], params["p"])

    return out.reshape(feat.shape)


# ----------------------------------------------------------------------------
# Parameter init (PyTorch-default-style) and a pure-JAX reference
# ----------------------------------------------------------------------------
def init_params(key, C):
    """Linear: uniform(+-1/sqrt(C)); LayerNorm: ones/zeros.
    W is stored as (C_in, C_out) == torch_linear.weight.T so the kernel does x @ W.
    b / ln_gamma / ln_beta are packed into one (3, C) array."""
    kw, kb = jax.random.split(key)
    bound = 1.0 / (C ** 0.5)
    w = jax.random.uniform(kw, (C, C), jnp.float32, -bound, bound)
    b = jax.random.uniform(kb, (C,), jnp.float32, -bound, bound)
    p = jnp.stack([b,
                   jnp.ones((C,), jnp.float32),     # LN gamma
                   jnp.zeros((C,), jnp.float32)])   # LN beta
    return dict(w=w, p=p)


def _reference(feat, params):
    y = feat @ params["w"] + params["p"][0]
    mu = y.mean(-1, keepdims=True)
    var = ((y - mu) ** 2).mean(-1, keepdims=True)
    yn = (y - mu) / jnp.sqrt(var + LN_EPS) * params["p"][1] + params["p"][2]
    return jnp.maximum(yn, 0.0)


if __name__ == "__main__":
    # Specificity_Estimator(feat_len=6, dim=64): feat is (batch, feat_len, dim).
    B, L, C = 2, 6, 64
    key = jax.random.PRNGKey(0)
    kx, kp = jax.random.split(key)
    feat = jax.random.normal(kx, (B, L, C), jnp.float32)
    params = init_params(kp, C)

    # Force the Pallas path at these tiny shapes and use tile_rows=8 so the
    # cdiv grid has 2 steps including a masked partial final block (exercises
    # the no-pad path).  At production M the default tile is 2048 rows.
    out = specificity_estimator_forward(feat, params, tile_rows=8,
                                        min_rows_for_pallas=0)
    jax.block_until_ready(out)
    assert out.shape == (B, L, C)
    assert out.dtype == feat.dtype

    ref = _reference(feat, params)
    # f32 operands everywhere; tolerance only covers default MXU matmul precision.
    assert float(jnp.max(jnp.abs(out - ref))) < 2e-2
    print("KERNEL_OK")
</pallas_src>

<mosaic_0001>
module attributes {stable_mosaic.version = 11 : i64} {
  func.func @mlp_block_kernel(%arg0: i32, %arg1: memref<8x64xf32, #tpu.memory_space<vmem>>, %arg2: memref<64x64xf32, #tpu.memory_space<vmem>>, %arg3: memref<3x64xf32, #tpu.memory_space<vmem>>, %arg4: memref<8x64xf32, #tpu.memory_space<vmem>>) attributes {dimension_semantics = [#tpu.dimension_semantics<parallel>], iteration_bounds = array<i64: 2>, scalar_prefetch = 0 : i64, scratch_operands = 0 : i64, tpu.core_type = #tpu.core_type<tc>, window_params = [{transform_indices = @transform_0, window_bounds = array<i64: 8, 64>}, {pipeline_mode = #tpu.pipeline_mode<synchronous>, transform_indices = @transform_1, window_bounds = array<i64: 64, 64>}, {pipeline_mode = #tpu.pipeline_mode<synchronous>, transform_indices = @transform_2, window_bounds = array<i64: 3, 64>}, {transform_indices = @transform_3, window_bounds = array<i64: 8, 64>}]} {
    %c0 = arith.constant 0 : index
    %c0_0 = arith.constant 0 : index
    %0 = vector.load %arg1[%c0, %c0_0] : memref<8x64xf32, #tpu.memory_space<vmem>>, vector<8x64xf32>
    %c0_1 = arith.constant 0 : index
    %c0_2 = arith.constant 0 : index
    %1 = vector.load %arg2[%c0_1, %c0_2] : memref<64x64xf32, #tpu.memory_space<vmem>>, vector<64x64xf32>
    %cst = arith.constant dense<0.000000e+00> : vector<8x64xf32>
    %2 = tpu.matmul %0, %1, %cst {dimension_numbers = #tpu.dot_dimension_numbers<[1], [0], [0], [1], [0, 0, 1, 1], [], []>} : vector<8x64xf32>, vector<64x64xf32>, vector<8x64xf32> -> vector<8x64xf32>
    %c0_3 = arith.constant 0 : index
    %c0_4 = arith.constant 0 : index
    %3 = vector.load %arg3[%c0_3, %c0_4] : memref<3x64xf32, #tpu.memory_space<vmem>>, vector<3x64xf32>
    %4 = vector.extract_strided_slice %3 {offsets = [0, 0], sizes = [1, 64], strides = [1, 1]} : vector<3x64xf32> to vector<1x64xf32>
    %5 = vector.broadcast %4 : vector<1x64xf32> to vector<8x64xf32>
    %6 = arith.addf %2, %5 : vector<8x64xf32>
    %cst_5 = arith.constant dense<0.000000e+00> : vector<8xf32>
    %7 = vector.multi_reduction <add>, %6, %cst_5 [1] : vector<8x64xf32> to vector<8xf32>
    %8 = vector.shape_cast %7 : vector<8xf32> to vector<8x1xf32>
    %cst_6 = arith.constant 6.400000e+01 : f32
    %9 = vector.broadcast %cst_6 : f32 to vector<8x1xf32>
    %10 = arith.divf %8, %9 : vector<8x1xf32>
    %11 = vector.broadcast %10 : vector<8x1xf32> to vector<8x64xf32>
    %12 = arith.subf %6, %11 : vector<8x64xf32>
    %13 = arith.mulf %12, %12 : vector<8x64xf32>
    %cst_7 = arith.constant dense<0.000000e+00> : vector<8xf32>
    %14 = vector.multi_reduction <add>, %13, %cst_7 [1] : vector<8x64xf32> to vector<8xf32>
    %15 = vector.shape_cast %14 : vector<8xf32> to vector<8x1xf32>
    %cst_8 = arith.constant 6.400000e+01 : f32
    %16 = vector.broadcast %cst_8 : f32 to vector<8x1xf32>
    %17 = arith.divf %15, %16 : vector<8x1xf32>
    %18 = vector.broadcast %10 : vector<8x1xf32> to vector<8x64xf32>
    %19 = arith.subf %6, %18 : vector<8x64xf32>
    %cst_9 = arith.constant 9.99999974E-6 : f32
    %20 = vector.broadcast %cst_9 : f32 to vector<8x1xf32>
    %21 = arith.addf %17, %20 : vector<8x1xf32>
    %22 = math.rsqrt %21 : vector<8x1xf32>
    %23 = vector.broadcast %22 : vector<8x1xf32> to vector<8x64xf32>
    %24 = arith.mulf %19, %23 : vector<8x64xf32>
    %25 = vector.extract_strided_slice %3 {offsets = [1, 0], sizes = [1, 64], strides = [1, 1]} : vector<3x64xf32> to vector<1x64xf32>
    %26 = vector.broadcast %25 : vector<1x64xf32> to vector<8x64xf32>
    %27 = arith.mulf %24, %26 : vector<8x64xf32>
    %28 = vector.extract_strided_slice %3 {offsets = [2, 0], sizes = [1, 64], strides = [1, 1]} : vector<3x64xf32> to vector<1x64xf32>
    %29 = vector.broadcast %28 : vector<1x64xf32> to vector<8x64xf32>
    %30 = arith.addf %27, %29 : vector<8x64xf32>
    %cst_10 = arith.constant 0.000000e+00 : f32
    %31 = vector.broadcast %cst_10 : f32 to vector<8x64xf32>
    %32 = arith.maximumf %30, %31 : vector<8x64xf32>
    %c0_11 = arith.constant 0 : index
    %c0_12 = arith.constant 0 : index
    %33 = vector.load %arg4[%c0_11, %c0_12] : memref<8x64xf32, #tpu.memory_space<vmem>>, vector<8x64xf32>
    tpu.vector_store %arg4[%c0_11, %c0_12], %32 {strides = array<i32>} : memref<8x64xf32, #tpu.memory_space<vmem>>, vector<8x64xf32>,
    return
  }
  func.func @transform_0(%arg0: i32) -> (i32, i32) {
    %c0_i32 = arith.constant 0 : i32
    %c0_i32_0 = arith.constant 0 : i32
    return %arg0, %c0_i32 : i32, i32
  }
  func.func @transform_1(%arg0: i32) -> (i32, i32) {
    %c0_i32 = arith.constant 0 : i32
    %c0_i32_0 = arith.constant 0 : i32
    %c0_i32_1 = arith.constant 0 : i32
    return %c0_i32, %c0_i32_0 : i32, i32
  }
  func.func @transform_2(%arg0: i32) -> (i32, i32) {
    %c0_i32 = arith.constant 0 : i32
    %c0_i32_0 = arith.constant 0 : i32
    %c0_i32_1 = arith.constant 0 : i32
    return %c0_i32, %c0_i32_0 : i32, i32
  }
  func.func @transform_3(%arg0: i32) -> (i32, i32) {
    %c0_i32 = arith.constant 0 : i32
    %c0_i32_0 = arith.constant 0 : i32
    return %arg0, %c0_i32 : i32, i32
  }
}

</mosaic_0001>

<llo_original>
// kernel: tpu_custom_call.1
$region0: #{tpu_custom_call.1}
  #allocation0 [shape = 'u32[]', space=smem, size = 0x4, offset = 0x4, fixed_abs, tag = 'smem constant byte address 0x4 - core index']
  #allocation1 [shape = 'u32[144,128]{1,0:T(1,128)}', space=vmem, size = 0x12000, scoped, tag = 'internal scratch']
  %s0 = inlined_call_operand.hbm [shape: f32[12,64], index: 0, kind: input, shape index: {}]
  %s1 = inlined_call_operand.hbm [shape: f32[64,64], index: 1, kind: input, shape index: {}]
  %s2 = inlined_call_operand.vmem [shape: f32[3,64], index: 2, kind: input, shape index: {}]
  %s3 = inlined_call_operand.hbm [shape: f32[12,64], index: 3, kind: output, shape index: {}]
  %s4 = sld [smem:[#allocation0]]
  $region53: #{tpu_custom_call.1} parent=0
    _
  %s6 = ssub.s32 1, %s4
  %s7 = scalar_select 0, %s6, %s4
  $region1: #{tpu_custom_call.1} parent=0
    #allocation2 [shape = 'u8[8192]{0}', space=vmem, size = 0x2000, scoped, tag = 'input window, operand 0']
    #allocation3 [shape = 's32[2]{0}', space=sflag, size = 0x8, scoped, tag = 'scoped memory for tpu_custom_call.1']
    #allocation4 [shape = 's32[2]{0}', space=sflag, size = 0x8, scoped, tag = 'scoped memory for tpu_custom_call.1']
    #allocation5 [shape = 'u8[32768]{0}', space=vmem, size = 0x8000, scoped, tag = 'input window, operand 1, single buffered']
    #allocation6 [shape = 's32[1]{0}', space=sflag, size = 0x4, scoped, tag = 'scoped memory for tpu_custom_call.1']
    #allocation7 [shape = 'u8[8192]{0}', space=vmem, size = 0x2000, scoped, tag = 'output window, operand 0']
    %8 = vsyncpa [#allocation3], 0
    %s9 = scalar_lea.sflag [#allocation3], 1
    %10 = vsyncpa %s9, 0
    %11 = vsyncpa [#allocation6], 0
    %12 = vsyncpa [#allocation4], 0
    %s13 = scalar_lea.sflag [#allocation4], 1
    %14 = vsyncpa %s13, 0
    loop: start=0, step=1, limit=4
    $region2: #{tpu_custom_call.1} parent=1 // loop_pre_header
      _
    $region3: #{tpu_custom_call.1} parent=1 // loop_header
      %s16 = sphi 0, %s20
      %p17 = scmp.ge.s32.totalorder %s16, 4
      %s26 = sphi 0, %s28
      %s29 = sphi 0, %s26
      %s30 = sphi 0, %s29
      %s46 = sphi 0, %s30
      %s50 = sphi 0, %s50
      %s52 = sphi 0, %s50
      %s53 = sphi 0, %s52
      %s67 = sphi 0, %s53
      %s71 = sphi 0, %s71
      %s73 = sphi 0, %s71
      %s74 = sphi 0, %s73
      %s88 = sphi 0, %s74
      %s94 = sphi 0, %s96
      %s97 = sphi 0, %s94
      %s98 = sphi 0, %s97
      %s114 = sphi 0, %s98
    $region4: #{tpu_custom_call.1} parent=1 // loop_header_branch
      %19 = sbr.rel (%p17) target = $region8
    $region5: #{tpu_custom_call.1} parent=1 // loop_body
      %s21 = ssub.s32 %s16, 1
      %s22 = ssub.s32 %s16, 2
      %s23 = sadd.s32 %s16, 1
      %s24 = ssub.s32 %s16, %s23
      %p25 = scmp.eq.s32.totalorder %s24, 0
      %s27 = sadd.s32 %s26, 1
      %s28 = scalar_select %p25, %s26, %s27
      %p31 = pneg %p25
      %p32 = scmp.eq.s32.totalorder %s16, 1
      %p33 = por %p31, %p32
      %p34 = scmp.ne.s32.totalorder %s26, %s29
      %p35 = scmp.eq.s32.totalorder %s16, 0
      %p36 = por %p34, %p35
      %p37 = scmp.ne.s32.totalorder %s26, %s29
      %p38 = scmp.eq.s32.totalorder %s21, 1
      %p39 = por %p37, %p38
      %p40 = scmp.ne.s32.totalorder %s29, %s30
      %p41 = scmp.eq.s32.totalorder %s21, 0
      %p42 = por %p40, %p41
      %p43 = scmp.ne.s32.totalorder %s29, %s30
      %p44 = scmp.eq.s32.totalorder %s22, 1
      %p45 = por %p43, %p44
      %p47 = scmp.ne.s32.totalorder %s30, %s46
      %p48 = scmp.eq.s32.totalorder %s22, 0
      %p49 = por %p47, %p48
      %s51 = sadd.s32 %s50, 1
      %p54 = scmp.eq.s32.totalorder %s16, 1
      %p55 = scmp.ne.s32.totalorder %s50, %s52
      %p56 = scmp.eq.s32.totalorder %s16, 0
      %p57 = por %p55, %p56
      %p58 = scmp.ne.s32.totalorder %s50, %s52
      %p59 = scmp.eq.s32.totalorder %s21, 1
      %p60 = por %p58, %p59
      %p61 = scmp.ne.s32.totalorder %s52, %s53
      %p62 = scmp.eq.s32.totalorder %s21, 0
      %p63 = por %p61, %p62
      %p64 = scmp.ne.s32.totalorder %s52, %s53
      %p65 = scmp.eq.s32.totalorder %s22, 1
      %p66 = por %p64, %p65
      %p68 = scmp.ne.s32.totalorder %s53, %s67
      %p69 = scmp.eq.s32.totalorder %s22, 0
      %p70 = por %p68, %p69
      %s72 = sadd.s32 %s71, 1
      %p75 = scmp.eq.s32.totalorder %s16, 1
      %p76 = scmp.ne.s32.totalorder %s71, %s73
      %p77 = scmp.eq.s32.totalorder %s16, 0
      %p78 = por %p76, %p77
      %p79 = scmp.ne.s32.totalorder %s71, %s73
      %p80 = scmp.eq.s32.totalorder %s21, 1
      %p81 = por %p79, %p80
      %p82 = scmp.ne.s32.totalorder %s73, %s74
      %p83 = scmp.eq.s32.totalorder %s21, 0
      %p84 = por %p82, %p83
      %p85 = scmp.ne.s32.totalorder %s73, %s74
      %p86 = scmp.eq.s32.totalorder %s22, 1
      %p87 = por %p85, %p86
      %p89 = scmp.ne.s32.totalorder %s74, %s88
      %p90 = scmp.eq.s32.totalorder %s22, 0
      %p91 = por %p89, %p90
      %s92 = ssub.s32 %s16, %s23
      %p93 = scmp.eq.s32.totalorder %s92, 0
      %s95 = sadd.s32 %s94, 1
      %s96 = scalar_select %p93, %s94, %s95
      %p99 = pneg %p93
      %p100 = scmp.eq.s32.totalorder %s16, 1
      %p101 = por %p99, %p100
      %p102 = scmp.ne.s32.totalorder %s94, %s97
      %p103 = scmp.eq.s32.totalorder %s16, 0
      %p104 = por %p102, %p103
      %p105 = scmp.ne.s32.totalorder %s94, %s97
      %p106 = scmp.eq.s32.totalorder %s21, 1
      %p107 = por %p105, %p106
      %p108 = scmp.ne.s32.totalorder %s97, %s98
      %p109 = scmp.eq.s32.totalorder %s21, 0
      %p110 = por %p108, %p109
      %p111 = scmp.ne.s32.totalorder %s97, %s98
      %p112 = scmp.eq.s32.totalorder %s22, 1
      %p113 = por %p111, %p112
      %p115 = scmp.ne.s32.totalorder %s98, %s114
      %p116 = scmp.eq.s32.totalorder %s22, 0
      %p117 = por %p115, %p116
      %p118 = scmp.le.s32.totalorder 1, %s16
      %p119 = scmp.lt.s32.totalorder %s16, 3
      %p120 = pnand %p118, %p119
      %p121 = pneg %p120
      // Predicated region
      $region9: #{tpu_custom_call.1} parent=5 // pred_check
        _
      $region10: #{tpu_custom_call.1} parent=5 // pred_check_branch
        %123 = sbr.rel (%p120) target = $region12
      $region11: #{tpu_custom_call.1} parent=5 // pred_region
        %s124 = ssub.s32 %s16, 1
        // Predicated region
        $region13: #{tpu_custom_call.1} parent=11 // pred_check
          %p125 = pneg %p63
        $region14: #{tpu_custom_call.1} parent=11 // pred_check_branch
          %127 = sbr.rel (%p125) target = $region16
        $region15: #{tpu_custom_call.1} parent=11 // pred_region
          %s129 = ssub.s32 1024, 1024
          %130 = vsyncadd [#allocation6], %s129
          %s131 = sshll.u32 [#allocation5], 4
          %s132 = int_to_ptr.vmem [resolvable:$true] %s131
          %137 = dma.hbm_to_vmem [thread:$0]  %s1, 1024, %s132, [#allocation6], 128, 128, 8
        $region16: #{tpu_custom_call.1} parent=11 // pred_fallthru
          _
        // Predicated region
        $region17: #{tpu_custom_call.1} parent=11 // pred_check
          %p138 = pneg %p84
        $region18: #{tpu_custom_call.1} parent=11 // pred_check_branch
          %140 = sbr.rel (%p138) target = $region20
        $region19: #{tpu_custom_call.1} parent=11 // pred_region
          _
        $region20: #{tpu_custom_call.1} parent=11 // pred_fallthru
          _
      $region12: #{tpu_custom_call.1} parent=5 // pred_fallthru
        _
      %p141 = scmp.lt.s32.totalorder %s16, 2
      // Predicated region
      $region21: #{tpu_custom_call.1} parent=5 // pred_check
        %p142 = pneg %p141
      $region22: #{tpu_custom_call.1} parent=5 // pred_check_branch
        %144 = sbr.rel (%p142) target = $region24
      $region23: #{tpu_custom_call.1} parent=5 // pred_region
        // Predicated region
        $region25: #{tpu_custom_call.1} parent=23 // pred_check
          %p145 = pneg %p36
        $region26: #{tpu_custom_call.1} parent=23 // pred_check_branch
          %147 = sbr.rel (%p145) target = $region28
        $region27: #{tpu_custom_call.1} parent=23 // pred_region
          %s148 = sand.u32 %s26, 1
          %s149 = scalar_lea.sflag [#allocation3], %s148
          %s150 = sand.u32 %s26, 1
          %s151 = smul.addr %s150, 8
          %s152 = scalar_lea.vmem [#allocation2], %s151
          %s154 = ssub.s32 128, 128
          %155 = vsyncadd %s149, %s154
          %s156 = smul.addr %s16, 128
          %s157 = scalar_lea.hbm %s0, %s156
          %s159 = sshll.u32 %s152, 4
          %s160 = int_to_ptr.vmem [resolvable:$true] %s159
          %162 = dma.hbm_to_vmem [thread:$0]  %s157, 128, %s160, %s149
        $region28: #{tpu_custom_call.1} parent=23 // pred_fallthru
          _
      $region24: #{tpu_custom_call.1} parent=5 // pred_fallthru
        _
      %p163 = scmp.le.s32.totalorder 1, %s16
      %p164 = scmp.lt.s32.totalorder %s16, 3
      %p165 = pnand %p163, %p164
      %p166 = pneg %p165
      // Predicated region
      $region29: #{tpu_custom_call.1} parent=5 // pred_check
        _
      $region30: #{tpu_custom_call.1} parent=5 // pred_check_branch
        %168 = sbr.rel (%p165) target = $region32
      $region31: #{tpu_custom_call.1} parent=5 // pred_region
        %s169 = ssub.s32 %s16, 1
        %s170 = sand.u32 %s29, 1
        %s171 = scalar_lea.sflag [#allocation3], %s170
        %s172 = sand.u32 %s29, 1
        %s173 = smul.addr %s172, 8
        %s174 = scalar_lea.vmem [#allocation2], %s173
        // Predicated region
        $region33: #{tpu_custom_call.1} parent=31 // pred_check
          %p175 = pneg %p42
        $region34: #{tpu_custom_call.1} parent=31 // pred_check_branch
          %177 = sbr.rel (%p175) target = $region36
        $region35: #{tpu_custom_call.1} parent=31 // pred_region
          %178 = dma.done %s171, 128
        $region36: #{tpu_custom_call.1} parent=31 // pred_fallthru
          _
        // Predicated region
        $region37: #{tpu_custom_call.1} parent=31 // pred_check
          %p179 = pneg %p63
        $region38: #{tpu_custom_call.1} parent=31 // pred_check_branch
          %181 = sbr.rel (%p179) target = $region40
        $region39: #{tpu_custom_call.1} parent=31 // pred_region
          %182 = dma.done [#allocation6], 1024
        $region40: #{tpu_custom_call.1} parent=31 // pred_fallthru
          _
        %s183 = sand.u32 %s29, 1
        %s184 = scalar_lea.sflag [#allocation3], %s183
        %s185 = sand.u32 %s29, 1
        %s186 = smul.addr %s185, 8
        %s187 = scalar_lea.vmem [#allocation2], %s186
        %p188 = pneg %p42
        %p189 = pneg %p39
        %p190 = pneg %p63
        %p191 = pneg %p60
        %p192 = pneg %p84
        %p193 = pneg %p81
        %p194 = pneg %p110
        %p195 = pneg %p107
        %s196 = sand.u32 %s97, 1
        %s197 = scalar_lea.sflag [#allocation4], %s196
        %s198 = sand.u32 %s97, 1
        %s199 = smul.addr %s198, 8
        %s200 = scalar_lea.vmem [#allocation7], %s199
        %v201 = vld [vmem:[%s174] sm:$0xff]
        %v202 = vld [vmem:[#allocation5] sm:$0xff]
        %v203 = vld [vmem:[#allocation5 + $0x8] sm:$0xff]
        %v204 = vld [vmem:[#allocation5 + $0x10] sm:$0xff]
        %v205 = vld [vmem:[#allocation5 + $0x18] sm:$0xff]
        %v206 = vld [vmem:[#allocation5 + $0x20] sm:$0xff]
        %v207 = vld [vmem:[#allocation5 + $0x28] sm:$0xff]
        %v208 = vld [vmem:[#allocation5 + $0x30] sm:$0xff]
        %v209 = vld [vmem:[#allocation5 + $0x38] sm:$0xff]
        %v210 = vld [vmem:[%s2] sm:$0x7]
        %v211 = vlaneseq
        %v212 = vshrl.u32 %v211, 7
        %v213 = vsub.s32 0, %v212
        %v214 = vrot.slane %v210, %v213
        %vm215 = vcmask 523264
        %v217 = vsel %vm215, %v201, 0
        %219 = vmatprep.subr.mxu0 0.0
        %220 = vmatpush1.msra.mxu0 %v202
        %221 = vmatprep.subr.mxu0 0.0
        %222 = vmatpush1.msra.mxu0 %v203
        %223 = vmatprep.subr.mxu0 0.0
        %224 = vmatpush1.msra.mxu0 %v204
        %225 = vmatprep.subr.mxu0 0.0
        %226 = vmatpush1.msra.mxu0 %v205
        %227 = vmatprep.subr.mxu0 0.0
        %228 = vmatpush1.msra.mxu0 %v206
        %229 = vmatprep.subr.mxu0 0.0
        %230 = vmatpush1.msra.mxu0 %v207
        %231 = vmatprep.subr.mxu0 0.0
        %232 = vmatpush1.msra.mxu0 %v208
        %233 = vmatprep.subr.mxu0 0.0
        %234 = vmatpush1.msra.mxu0 %v209
        %235 = vmatprep.subr.mxu0 0.0
        %236 = vmatpush1.msra.mxu0 0.0
        %237 = vmatprep.subr.mxu0 0.0
        %238 = vmatpush1.msra.mxu0 0.0
        %239 = vmatprep.subr.mxu0 0.0
        %240 = vmatpush1.msra.mxu0 0.0
        %241 = vmatprep.subr.mxu0 0.0
        %242 = vmatpush1.msra.mxu0 0.0
        %243 = vmatprep.subr.mxu0 0.0
        %244 = vmatpush1.msra.mxu0 0.0
        %245 = vmatprep.subr.mxu0 0.0
        %246 = vmatpush1.msra.mxu0 0.0
        %247 = vmatprep.subr.mxu0 0.0
        %248 = vmatpush1.msra.mxu0 0.0
        %249 = vmatprep.subr.mxu0 0.0
        %250 = vmatpush1.msra.mxu0 0.0
        %251 = vmatprep.subr.mxu0 0.0
        %252 = vmatpush1.msra.mxu0 0.0
        %253 = vmatprep.subr.mxu0 0.0
        %254 = vmatpush1.msra.mxu0 0.0
        %255 = vmatprep.subr.mxu0 0.0
        %256 = vmatpush1.msra.mxu0 0.0
        %257 = vmatprep.subr.mxu0 0.0
        %258 = vmatpush1.msra.mxu0 0.0
        %259 = vmatprep.subr.mxu0 0.0
        %260 = vmatpush1.msra.mxu0 0.0
        %261 = vmatprep.subr.mxu0 0.0
        %262 = vmatpush1.msra.mxu0 0.0
        %263 = vmatprep.subr.mxu0 0.0
        %264 = vmatpush1.msra.mxu0 0.0
        %265 = vmatprep.subr.mxu0 0.0
        %266 = vmatpush1.msra.mxu0 0.0
        %267 = vmatprep.subr.mxu0 0.0
        %268 = vmatpush1.msra.mxu0 0.0
        %269 = vmatprep.subr.mxu0 0.0
        %270 = vmatpush1.msra.mxu0 0.0
        %271 = vmatprep.subr.mxu0 0.0
        %272 = vmatpush1.msra.mxu0 0.0
        %273 = vmatprep.subr.mxu0 0.0
        %274 = vmatpush1.msra.mxu0 0.0
        %275 = vmatprep.subr.mxu0 0.0
        %276 = vmatpush1.msra.mxu0 0.0
        %277 = vmatprep.subr.mxu0 0.0
        %278 = vmatpush1.msra.mxu0 0.0
        %279 = vmatprep.subr.mxu0 0.0
        %280 = vmatpush1.msra.mxu0 0.0
        %281 = vmatprep.subr.mxu0 0.0
        %282 = vmatpush1.msra.mxu0 0.0
        %283 = vmatprep.mubr.f32.mxu0 0.0
        %284 = vmatmul.mubr.f32.gmra.mrb[0].mxu0 %v217
        %v285 = vpop.f32.mrb[0].mxu0
        %v286 = vadd.f32 %v214, %v285
        %v287 = vpop.f32.mrb[0].mxu0
        %288 = vdwg.mxu0
        %v289 = vsel %vm215, %v286, 0.0
        %290 = vadd.xlane.f32.xlu0 %v289
        %v291 = vpop.xlane.xlu0 %290
        %v292 = vrcp.pop 64.0
        %v293 = vmul.f32 %v291, %v292
        %v294 = vsub.f32 %v286, %v293
        %v295 = vmul.f32 %v294, %v294
        %v296 = vsel %vm215, %v295, 0.0
        %297 = vadd.xlane.f32.xlu0 %v296
        %v298 = vpop.xlane.xlu0 %297
        %v299 = vmul.f32 %v298, %v292
        %v300 = vadd.f32 %v299, 1e-05
        %v301 = vrsqrt.pop %v300
        %v302 = vmul.f32 %v294, %v301
        %v303 = vlaneseq
        %v304 = vshrl.u32 %v303, 7
        %v305 = vsub.s32 1, %v304
        %v306 = vrot.slane %v210, %v305
        %v307 = vmul.f32 %v302, %v306
        %v308 = vlaneseq
        %v309 = vshrl.u32 %v308, 7
        %v310 = vsub.s32 2, %v309
        %v311 = vrot.slane %v210, %v310
        %v312 = vadd.f32 %v307, %v311
        %v313 = vmax.f32 %v312, 0.0
        %314 = vst.msk [vmem:[%s200] sm:$0xff] %vm215, %v313
        %s315 = sand.u32 %s97, 1
        %s316 = scalar_lea.sflag [#allocation4], %s315
        %s317 = sand.u32 %s97, 1
        %s318 = smul.addr %s317, 8
        %s319 = scalar_lea.vmem [#allocation7], %s318
        // Predicated region
        $region41: #{tpu_custom_call.1} parent=31 // pred_check
          %p320 = pneg %p107
        $region42: #{tpu_custom_call.1} parent=31 // pred_check_branch
          %322 = sbr.rel (%p320) target = $region44
        $region43: #{tpu_custom_call.1} parent=31 // pred_region
          %s324 = ssub.s32 128, 128
          %325 = vsyncadd %s316, %s324
          %s326 = smul.addr %s21, 128
          %s327 = scalar_lea.hbm %s3, %s326
          %s329 = sshll.u32 %s319, 4
          %s330 = int_to_ptr.vmem [resolvable:$true] %s329
          %332 = dma.vmem_to_hbm [thread:$0]  %s330, 128, %s327, %s316
        $region44: #{tpu_custom_call.1} parent=31 // pred_fallthru
          _
      $region32: #{tpu_custom_call.1} parent=5 // pred_fallthru
        _
      %p333 = scmp.le.s32.totalorder 2, %s16
      // Predicated region
      $region45: #{tpu_custom_call.1} parent=5 // pred_check
        %p334 = pneg %p333
      $region46: #{tpu_custom_call.1} parent=5 // pred_check_branch
        %336 = sbr.rel (%p334) target = $region48
      $region47: #{tpu_custom_call.1} parent=5 // pred_region
        %s337 = ssub.s32 %s16, 2
        // Predicated region
        $region49: #{tpu_custom_call.1} parent=47 // pred_check
          %p338 = pneg %p113
        $region50: #{tpu_custom_call.1} parent=47 // pred_check_branch
          %340 = sbr.rel (%p338) target = $region52
        $region51: #{tpu_custom_call.1} parent=47 // pred_region
          %s341 = sand.u32 %s98, 1
          %s342 = scalar_lea.sflag [#allocation4], %s341
          %s343 = sand.u32 %s98, 1
          %s344 = smul.addr %s343, 8
          %s345 = scalar_lea.vmem [#allocation7], %s344
          %346 = dma.done %s342, 128
        $region52: #{tpu_custom_call.1} parent=47 // pred_fallthru
          _
      $region48: #{tpu_custom_call.1} parent=5 // pred_fallthru
        _
    $region6: #{tpu_custom_call.1} parent=1 // loop_footer
      %s20 = sadd.s32 1, %s16
    $region7: #{tpu_custom_call.1} parent=1 // loop_footer_branch
      %15 = sbr.rel target = $region3
    $region8: #{tpu_custom_call.1} parent=1 // loop_exit
      _
    %347 = vsyncpa [#allocation3], 1
    %s348 = scalar_lea.sflag [#allocation3], 1
    %349 = vsyncpa %s348, 1
    %350 = vsyncpa [#allocation6], 1
    %351 = vsyncpa [#allocation4], 1
    %s352 = scalar_lea.sflag [#allocation4], 1
    %353 = vsyncpa %s352, 1

</llo_original>
